<compile_context>
chip_gen: v7x
topology: tpu7x:2x2x1
jax: 0.10.0
libtpu: 0.0.40
codegen_flags: <defaults>
</compile_context>

<pallas_src>
import jax
import jax.numpy as jnp
from jax.experimental import pallas as pl
from jax.experimental.pallas import tpu as pltpu


def _round_up(a: int, m: int) -> int:
    return ((a + m - 1) // m) * m


def _divisor_tile(extent: int, cap: int, align: int) -> int:
    """Largest multiple of `align` that is <= cap and divides `extent` (extent % align == 0)."""
    t = min(cap, extent)
    t = max((t // align) * align, align)
    while extent % t != 0:
        t -= align
    return t


# ---------------------------------------------------------------------------
# Kernels
# ---------------------------------------------------------------------------
def _kernel_fullk(scale_ref, x_ref, w_ref, b_ref, o_ref):
    # x_ref: (tm, Kp) bf16, w_ref: (Kp, tn) bf16, b_ref: (1, tn) f32 (already * k_lip)
    # scale_ref: SMEM (1,) f32 == k_lipschitz / sigma
    acc = jnp.dot(x_ref[...], w_ref[...], preferred_element_type=jnp.float32)
    o_ref[...] = (scale_ref[0] * acc + b_ref[...]).astype(o_ref.dtype)


def _kernel_splitk_f32out(scale_ref, x_ref, w_ref, b_ref, o_ref):
    # f32 output block is resident across k -> accumulate directly, no scratch.
    k = pl.program_id(2)

    @pl.when(k == 0)
    def _():
        o_ref[...] = jnp.zeros_like(o_ref)

    o_ref[...] += jnp.dot(x_ref[...], w_ref[...], preferred_element_type=jnp.float32)

    @pl.when(k == pl.num_programs(2) - 1)
    def _():
        o_ref[...] = scale_ref[0] * o_ref[...] + b_ref[...]


def _kernel_splitk_acc(scale_ref, x_ref, w_ref, b_ref, o_ref, acc_ref):
    # Low-precision output: keep an f32 VMEM accumulator.
    k = pl.program_id(2)

    @pl.when(k == 0)
    def _():
        acc_ref[...] = jnp.zeros_like(acc_ref)

    acc_ref[...] += jnp.dot(x_ref[...], w_ref[...], preferred_element_type=jnp.float32)

    @pl.when(k == pl.num_programs(2) - 1)
    def _():
        o_ref[...] = (scale_ref[0] * acc_ref[...] + b_ref[...]).astype(o_ref.dtype)


# ---------------------------------------------------------------------------
# Wrapper
# ---------------------------------------------------------------------------
def prepare_spectral_linear_weight(weight, *, mxu_dtype=jnp.bfloat16):
    """Pad + transpose + cast W once: (N, K) f32 -> (Kp, Np) mxu_dtype.

    Hoist this out of the per-call path (serving / repeated forwards) and pass the
    result as `wT_prepared=` to `spectral_linear_pallas`.
    """
    N, K = weight.shape
    Kp, Np = _round_up(K, 128), _round_up(N, 128)
    w_p = jnp.pad(weight, ((0, Np - N), (0, Kp - K)))
    return jnp.asarray(w_p.T, dtype=mxu_dtype)


def spectral_linear_pallas(x, weight, bias, u, *, k_lipschitz=1.0, eps=1e-12,
                           mxu_dtype=jnp.bfloat16,
                           tm_cap=512, tn_cap=2048, tk_cap=2048,
                           vmem_budget_bytes=40 * 1024 * 1024,
                           wT_prepared=None):
    """y = k_lipschitz * (x @ (W / sigma)^T + b); returns (y, u_new)."""
    M, K = x.shape
    N, K2 = weight.shape
    assert K == K2, (K, K2)

    # --- power iteration / sigma (tiny matvecs, f32 master weight, plain-JAX glue) ---
    w32 = weight.astype(jnp.float32)
    v = w32.T @ u.astype(jnp.float32)
    v = v / jnp.maximum(jnp.linalg.norm(v), eps)          # F.normalize convention
    wv = w32 @ v
    u_new = wv / jnp.maximum(jnp.linalg.norm(wv), eps)
    sigma = u_new @ wv                                     # == u_new^T W v (torch)
    scale = (k_lipschitz / sigma).reshape(1).astype(jnp.float32)

    # --- lane-dense padding (minimal: M -> sublane-pack multiple, N/K -> 128) ---
    in_isz = jnp.dtype(mxu_dtype).itemsize
    out_dtype = x.dtype
    out_isz = jnp.dtype(out_dtype).itemsize
    m_align = max(8, 32 // in_isz)                         # 16 for bf16, 8 for f32
    Mp, Kp, Np = _round_up(M, m_align), _round_up(K, 128), _round_up(N, 128)

    x_p = jnp.pad(x, ((0, Mp - M), (0, Kp - K))).astype(mxu_dtype)
    wT_p = wT_prepared if wT_prepared is not None else \
        prepare_spectral_linear_weight(weight, mxu_dtype=mxu_dtype)   # (Kp, Np)
    b_p = jnp.pad((k_lipschitz * bias).astype(jnp.float32), (0, Np - N)).reshape(1, Np)

    # --- tile sizing: tiles are divisors of the padded extents (no tile-size blowup) ---
    tm = _divisor_tile(Mp, tm_cap, m_align)
    tn = _divisor_tile(Np, tn_cap, 128)
    split_k = Kp > tk_cap
    tk = Kp if not split_k else _divisor_tile(Kp, tk_cap, 128)

    def vmem_need(tm_, tn_, tk_, split_):
        need = 2 * tm_ * tk_ * in_isz        # x tile, double buffered
        need += 2 * tk_ * tn_ * in_isz       # W tile, double buffered
        need += 2 * tm_ * tn_ * out_isz      # out tile, double buffered
        need += 2 * tn_ * 4                  # bias
        if split_ and jnp.dtype(out_dtype) != jnp.float32:
            need += tm_ * tn_ * 4            # f32 accumulator scratch
        return need

    # Greedy shrink to fit the VMEM budget (keep headroom for v7x's 64 MiB/TC).
    while vmem_need(tm, tn, tk, split_k) > vmem_budget_bytes:
        if tn > 128:
            tn = _divisor_tile(Np, tn // 2, 128)
        elif tm > m_align:
            tm = _divisor_tile(Mp, tm // 2, m_align)
        elif tk > 128:
            split_k = True
            tk = _divisor_tile(Kp, tk // 2, 128)
        else:
            break

    # v7x megacore: give the parallel axes combined extent >= 2 when shapes allow.
    if (Mp // tm) * (Np // tn) < 2:
        if tm >= 2 * m_align:
            tm = _divisor_tile(Mp, tm // 2, m_align)
        elif tn >= 2 * 128:
            tn = _divisor_tile(Np, tn // 2, 128)

    gi, gj = Mp // tm, Np // tn
    need = vmem_need(tm, tn, tk, split_k)
    vmem_limit = int(min(64 * 1024 * 1024, max(32 * 1024 * 1024, 2 * need)))

    # --- grid spec / kernel selection ---
    if not split_k:
        grid = (gi, gj)
        in_specs = [
            pl.BlockSpec((tm, Kp), lambda i, j, s: (i, 0)),    # x
            pl.BlockSpec((Kp, tn), lambda i, j, s: (0, j)),    # W^T (DMA'd once if tn==Np)
            pl.BlockSpec((1, tn),  lambda i, j, s: (0, j)),    # k_lipschitz * b
        ]
        out_specs = pl.BlockSpec((tm, tn), lambda i, j, s: (i, j))
        kernel, scratch_shapes = _kernel_fullk, []
        dim_sem = ("parallel", "parallel")
        x_reads, w_reads = 1, (1 if gj == 1 else gi)
    else:
        gk = Kp // tk
        grid = (gi, gj, gk)
        in_specs = [
            pl.BlockSpec((tm, tk), lambda i, j, k, s: (i, k)),
            pl.BlockSpec((tk, tn), lambda i, j, k, s: (k, j)),
            pl.BlockSpec((1, tn),  lambda i, j, k, s: (0, j)),
        ]
        out_specs = pl.BlockSpec((tm, tn), lambda i, j, k, s: (i, j))
        if jnp.dtype(out_dtype) == jnp.float32:
            kernel, scratch_shapes = _kernel_splitk_f32out, []
        else:
            kernel, scratch_shapes = _kernel_splitk_acc, [pltpu.VMEM((tm, tn), jnp.float32)]
        dim_sem = ("parallel", "parallel", "arbitrary")
        x_reads, w_reads = gj, gi

    bytes_accessed = (x_reads * Mp * Kp * in_isz
                      + w_reads * Kp * Np * in_isz
                      + Mp * Np * out_isz
                      + 2 * Np * 4)

    out_p = pl.pallas_call(
        kernel,
        out_shape=jax.ShapeDtypeStruct((Mp, Np), out_dtype),
        grid_spec=pltpu.PrefetchScalarGridSpec(
            num_scalar_prefetch=1,               # `scale` -> SMEM
            grid=grid,
            in_specs=in_specs,
            out_specs=out_specs,
            scratch_shapes=scratch_shapes,
        ),
        compiler_params=pltpu.CompilerParams(
            dimension_semantics=dim_sem,
            vmem_limit_bytes=vmem_limit,
        ),
        cost_estimate=pl.CostEstimate(
            flops=2 * Mp * Np * Kp,
            transcendentals=0,
            bytes_accessed=bytes_accessed),
    )(scale, x_p, wT_p, b_p)

    return out_p[:M, :N], u_new


# ---------------------------------------------------------------------------
# Reference + demo
# ---------------------------------------------------------------------------
def _reference(x, weight, bias, u, *, k_lipschitz=1.0, eps=1e-12):
    v = weight.T @ u
    v = v / jnp.maximum(jnp.linalg.norm(v), eps)
    wv = weight @ v
    u_new = wv / jnp.maximum(jnp.linalg.norm(wv), eps)
    sigma = u_new @ wv
    return k_lipschitz * (x @ (weight / sigma).T + bias), u_new


if __name__ == "__main__":
    key = jax.random.PRNGKey(0)
    k_x, k_w, k_b, k_u = jax.random.split(key, 4)

    batch, input_dim, output_dim = 8, 32, 16
    k_lipschitz = 1.0

    x = jax.random.normal(k_x, (batch, input_dim), dtype=jnp.float32)
    # nn.Linear-style init (uniform in +-1/sqrt(fan_in)).
    bound = 1.0 / jnp.sqrt(input_dim)
    weight = jax.random.uniform(k_w, (output_dim, input_dim),
                                minval=-bound, maxval=bound, dtype=jnp.float32)
    bias = jax.random.uniform(k_b, (output_dim,),
                              minval=-bound, maxval=bound, dtype=jnp.float32)
    # spectral_norm's power-iteration vector u (normalized gaussian).
    u = jax.random.normal(k_u, (output_dim,), dtype=jnp.float32)
    u = u / jnp.maximum(jnp.linalg.norm(u), 1e-12)

    y, u_new = spectral_linear_pallas(x, weight, bias, u, k_lipschitz=k_lipschitz)
    y = jax.block_until_ready(y)

    y_ref, u_ref = _reference(x, weight, bias, u, k_lipschitz=k_lipschitz)
    assert y.shape == (batch, output_dim)
    # Loose tolerance: kernel uses bf16 MXU inputs with f32 accumulation.
    assert jnp.allclose(y, y_ref, atol=5e-2, rtol=5e-2), \
        float(jnp.max(jnp.abs(y - y_ref)))
    assert jnp.allclose(u_new, u_ref, atol=1e-5, rtol=1e-5)
    print("KERNEL_OK")
</pallas_src>

<mosaic_0001>
module attributes {stable_mosaic.version = 11 : i64} {
  func.func @_kernel_fullk(%arg0: i32, %arg1: i32, %arg2: memref<1xf32, #tpu.memory_space<smem>>, %arg3: memref<16x128xbf16, #tpu.memory_space<vmem>>, %arg4: memref<128x128xbf16, #tpu.memory_space<vmem>>, %arg5: memref<1x128xf32, #tpu.memory_space<vmem>>, %arg6: memref<16x128xf32, #tpu.memory_space<vmem>>) attributes {dimension_semantics = [#tpu.dimension_semantics<parallel>, #tpu.dimension_semantics<parallel>], iteration_bounds = array<i64: 1, 1>, scalar_prefetch = 1 : i64, scratch_operands = 0 : i64, tpu.core_type = #tpu.core_type<tc>, window_params = [{transform_indices = @transform_0, window_bounds = array<i64: 16, 128>}, {transform_indices = @transform_1, window_bounds = array<i64: 128, 128>}, {transform_indices = @transform_2, window_bounds = array<i64: 1, 128>}, {transform_indices = @transform_3, window_bounds = array<i64: 16, 128>}]} {
    %c0 = arith.constant 0 : index
    %c0_0 = arith.constant 0 : index
    %0 = vector.load %arg3[%c0, %c0_0] : memref<16x128xbf16, #tpu.memory_space<vmem>>, vector<16x128xbf16>
    %c0_1 = arith.constant 0 : index
    %c0_2 = arith.constant 0 : index
    %1 = vector.load %arg4[%c0_1, %c0_2] : memref<128x128xbf16, #tpu.memory_space<vmem>>, vector<128x128xbf16>
    %cst = arith.constant dense<0.000000e+00> : vector<16x128xf32>
    %2 = tpu.matmul %0, %1, %cst {dimension_numbers = #tpu.dot_dimension_numbers<[1], [0], [0], [1], [0, 0, 1, 1], [], []>} : vector<16x128xbf16>, vector<128x128xbf16>, vector<16x128xf32> -> vector<16x128xf32>
    %c0_3 = arith.constant 0 : index
    %3 = memref.load %arg2[%c0_3] : memref<1xf32, #tpu.memory_space<smem>>
    %4 = vector.broadcast %3 : f32 to vector<16x128xf32>
    %5 = arith.mulf %4, %2 : vector<16x128xf32>
    %c0_4 = arith.constant 0 : index
    %c0_5 = arith.constant 0 : index
    %6 = vector.load %arg5[%c0_4, %c0_5] : memref<1x128xf32, #tpu.memory_space<vmem>>, vector<1x128xf32>
    %7 = vector.broadcast %6 : vector<1x128xf32> to vector<16x128xf32>
    %8 = arith.addf %5, %7 : vector<16x128xf32>
    %c0_6 = arith.constant 0 : index
    %c0_7 = arith.constant 0 : index
    %9 = vector.load %arg6[%c0_6, %c0_7] : memref<16x128xf32, #tpu.memory_space<vmem>>, vector<16x128xf32>
    tpu.vector_store %arg6[%c0_6, %c0_7], %8 {strides = array<i32>} : memref<16x128xf32, #tpu.memory_space<vmem>>, vector<16x128xf32>,
    return
  }
  func.func @transform_0(%arg0: i32, %arg1: i32, %arg2: memref<1xf32, #tpu.memory_space<smem>>) -> (i32, i32) {
    %c0_i32 = arith.constant 0 : i32
    %c0_i32_0 = arith.constant 0 : i32
    return %arg0, %c0_i32 : i32, i32
  }
  func.func @transform_1(%arg0: i32, %arg1: i32, %arg2: memref<1xf32, #tpu.memory_space<smem>>) -> (i32, i32) {
    %c0_i32 = arith.constant 0 : i32
    %c0_i32_0 = arith.constant 0 : i32
    return %c0_i32, %arg1 : i32, i32
  }
  func.func @transform_2(%arg0: i32, %arg1: i32, %arg2: memref<1xf32, #tpu.memory_space<smem>>) -> (i32, i32) {
    %c0_i32 = arith.constant 0 : i32
    %c0_i32_0 = arith.constant 0 : i32
    return %c0_i32, %arg1 : i32, i32
  }
  func.func @transform_3(%arg0: i32, %arg1: i32, %arg2: memref<1xf32, #tpu.memory_space<smem>>) -> (i32, i32) {
    %c0_i32 = arith.constant 0 : i32
    return %arg0, %arg1 : i32, i32
  }
}

</mosaic_0001>

<llo_original>
// kernel: tpu_custom_call.1
$region0: #{tpu_custom_call.1}
  #allocation0 [shape = 'u32[]', space=smem, size = 0x4, offset = 0x4, fixed_abs, tag = 'smem constant byte address 0x4 - core index']
  #allocation1 [shape = 'u32[144,128]{1,0:T(1,128)}', space=vmem, size = 0x12000, scoped, tag = 'internal scratch']
  #allocation2 [shape = 's32[1]{0}', space=sflag, size = 0x4, scoped, tag = 'scoped memory for tpu_custom_call.1']
  #allocation3 [shape = 'f32[1]{0:T(128)S(6)}', space=smem, size = 0x200, scoped, tag = 'prefetched SMEM operand 0']
  %s0 = inlined_call_operand.<no memory space> [shape: f32[1], index: 0, kind: input, shape index: {}]
  %s1 = inlined_call_operand.hbm [shape: bf16[16,128], index: 1, kind: input, shape index: {}]
  %s2 = inlined_call_operand.hbm [shape: bf16[128,128], index: 2, kind: input, shape index: {}]
  %s3 = inlined_call_operand.vmem [shape: f32[1,128], index: 3, kind: input, shape index: {}]
  %s4 = inlined_call_operand.hbm [shape: f32[16,128], index: 4, kind: output, shape index: {}]
  %s5 = sld [smem:[#allocation0]]
  $region30: #{tpu_custom_call.1} parent=0
    _
  %s7 = ssub.s32 1, %s5
  %s8 = scalar_select 0, %s7, %s5
  %9 = sst [smem:[#allocation3]] %s0
  $region1: #{tpu_custom_call.1} parent=0
    #allocation4 [shape = 'u8[4096]{0}', space=vmem, size = 0x1000, scoped, tag = 'input window, operand 1, single buffered']
    #allocation5 [shape = 's32[1]{0}', space=sflag, size = 0x4, scoped, tag = 'scoped memory for tpu_custom_call.1']
    #allocation6 [shape = 's32[1]{0}', space=sflag, size = 0x4, scoped, tag = 'scoped memory for tpu_custom_call.1']
    #allocation7 [shape = 'u8[32768]{0}', space=vmem, size = 0x8000, scoped, tag = 'input window, operand 2, single buffered']
    #allocation8 [shape = 's32[1]{0}', space=sflag, size = 0x4, scoped, tag = 'scoped memory for tpu_custom_call.1']
    #allocation9 [shape = 'u8[8192]{0}', space=vmem, size = 0x2000, scoped, tag = 'output window, operand 0, single buffered']
    %10 = vsyncpa [#allocation5], 0
    %11 = vsyncpa [#allocation8], 0
    %12 = vsyncpa [#allocation6], 0
    // Predicated region
    $region2: #{tpu_custom_call.1} parent=1 // pred_check
      _
    $region3: #{tpu_custom_call.1} parent=1 // pred_check_branch
      %14 = sbr.rel (0) target = $region5
    $region4: #{tpu_custom_call.1} parent=1 // pred_region
      %s16 = ssub.s32 128, 128
      %17 = vsyncadd [#allocation5], %s16
      %s18 = sshll.u32 [#allocation4], 4
      %s19 = int_to_ptr.vmem [resolvable:$true] %s18
      %24 = dma.hbm_to_vmem [thread:$0]  %s1, 128, %s19, [#allocation5], 64, 64, 4
    $region5: #{tpu_custom_call.1} parent=1 // pred_fallthru
      _
    // Predicated region
    $region6: #{tpu_custom_call.1} parent=1 // pred_check
      _
    $region7: #{tpu_custom_call.1} parent=1 // pred_check_branch
      %26 = sbr.rel (0) target = $region9
    $region8: #{tpu_custom_call.1} parent=1 // pred_region
      %s28 = ssub.s32 1024, 1024
      %29 = vsyncadd [#allocation8], %s28
      %s30 = sshll.u32 [#allocation7], 4
      %s31 = int_to_ptr.vmem [resolvable:$true] %s30
      %36 = dma.hbm_to_vmem [thread:$0]  %s2, 1024, %s31, [#allocation8], 64, 64, 4
    $region9: #{tpu_custom_call.1} parent=1 // pred_fallthru
      _
    // Predicated region
    $region10: #{tpu_custom_call.1} parent=1 // pred_check
      _
    $region11: #{tpu_custom_call.1} parent=1 // pred_check_branch
      %38 = sbr.rel (0) target = $region13
    $region12: #{tpu_custom_call.1} parent=1 // pred_region
      _
    $region13: #{tpu_custom_call.1} parent=1 // pred_fallthru
      _
    // Predicated region
    $region14: #{tpu_custom_call.1} parent=1 // pred_check
      _
    $region15: #{tpu_custom_call.1} parent=1 // pred_check_branch
      %40 = sbr.rel (0) target = $region17
    $region16: #{tpu_custom_call.1} parent=1 // pred_region
      %41 = dma.done [#allocation5], 128
    $region17: #{tpu_custom_call.1} parent=1 // pred_fallthru
      _
    // Predicated region
    $region18: #{tpu_custom_call.1} parent=1 // pred_check
      _
    $region19: #{tpu_custom_call.1} parent=1 // pred_check_branch
      %43 = sbr.rel (0) target = $region21
    $region20: #{tpu_custom_call.1} parent=1 // pred_region
      %44 = dma.done [#allocation8], 1024
    $region21: #{tpu_custom_call.1} parent=1 // pred_fallthru
      _
    %v46 = vld [vmem:[#allocation4] sm:$0xf]
    %v47 = vld [vmem:[#allocation4 + $0x4] sm:$0xf]
    %v48 = vld [vmem:[#allocation7] sm:$0xf]
    %v49 = vld [vmem:[#allocation7 + $0x4] sm:$0xf]
    %v50 = vld [vmem:[#allocation7 + $0x8] sm:$0xf]
    %v51 = vld [vmem:[#allocation7 + $0xc] sm:$0xf]
    %v52 = vld [vmem:[#allocation7 + $0x10] sm:$0xf]
    %v53 = vld [vmem:[#allocation7 + $0x14] sm:$0xf]
    %v54 = vld [vmem:[#allocation7 + $0x18] sm:$0xf]
    %v55 = vld [vmem:[#allocation7 + $0x1c] sm:$0xf]
    %v56 = vld [vmem:[#allocation7 + $0x20] sm:$0xf]
    %v57 = vld [vmem:[#allocation7 + $0x24] sm:$0xf]
    %v58 = vld [vmem:[#allocation7 + $0x28] sm:$0xf]
    %v59 = vld [vmem:[#allocation7 + $0x2c] sm:$0xf]
    %v60 = vld [vmem:[#allocation7 + $0x30] sm:$0xf]
    %v61 = vld [vmem:[#allocation7 + $0x34] sm:$0xf]
    %v62 = vld [vmem:[#allocation7 + $0x38] sm:$0xf]
    %v63 = vld [vmem:[#allocation7 + $0x3c] sm:$0xf]
    %v66 = vunpack.c.l.b16 %v46
    %v67 = vunpack.c.l.b16 %v47
    %v68 = vpack.c.b16 %v67, %v66
    %v86 = vunpack.c.l.b16 %v48
    %v87 = vunpack.c.l.b16 %v49
    %v88 = vunpack.c.l.b16 %v50
    %v89 = vunpack.c.l.b16 %v51
    %v90 = vunpack.c.l.b16 %v52
    %v91 = vunpack.c.l.b16 %v53
    %v92 = vunpack.c.l.b16 %v54
    %v93 = vunpack.c.l.b16 %v55
    %v94 = vunpack.c.l.b16 %v56
    %v95 = vunpack.c.l.b16 %v57
    %v96 = vunpack.c.l.b16 %v58
    %v97 = vunpack.c.l.b16 %v59
    %v98 = vunpack.c.l.b16 %v60
    %v99 = vunpack.c.l.b16 %v61
    %v100 = vunpack.c.l.b16 %v62
    %v101 = vunpack.c.l.b16 %v63
    %v102 = vpack.c.b16 %v87, %v86
    %v103 = vpack.c.b16 %v89, %v88
    %v104 = vpack.c.b16 %v91, %v90
    %v105 = vpack.c.b16 %v93, %v92
    %v106 = vpack.c.b16 %v95, %v94
    %v107 = vpack.c.b16 %v97, %v96
    %v108 = vpack.c.b16 %v99, %v98
    %v109 = vpack.c.b16 %v101, %v100
    %118 = vmatprep.subr.bf16.mxu0 0
    %119 = vmatpush1.bf16.msra.mxu0 %v102
    %120 = vmatprep.subr.bf16.mxu0 0
    %121 = vmatpush1.bf16.msra.mxu0 %v103
    %122 = vmatprep.subr.bf16.mxu0 0
    %123 = vmatpush1.bf16.msra.mxu0 %v104
    %124 = vmatprep.subr.bf16.mxu0 0
    %125 = vmatpush1.bf16.msra.mxu0 %v105
    %126 = vmatprep.subr.bf16.mxu0 0
    %127 = vmatpush1.bf16.msra.mxu0 %v106
    %128 = vmatprep.subr.bf16.mxu0 0
    %129 = vmatpush1.bf16.msra.mxu0 %v107
    %130 = vmatprep.subr.bf16.mxu0 0
    %131 = vmatpush1.bf16.msra.mxu0 %v108
    %132 = vmatprep.subr.bf16.mxu0 0
    %133 = vmatpush1.bf16.msra.mxu0 %v109
    %134 = vmatprep.subr.bf16.mxu0 0
    %135 = vmatpush1.bf16.msra.mxu0 0
    %136 = vmatprep.subr.bf16.mxu0 0
    %137 = vmatpush1.bf16.msra.mxu0 0
    %138 = vmatprep.subr.bf16.mxu0 0
    %139 = vmatpush1.bf16.msra.mxu0 0
    %140 = vmatprep.subr.bf16.mxu0 0
    %141 = vmatpush1.bf16.msra.mxu0 0
    %142 = vmatprep.subr.bf16.mxu0 0
    %143 = vmatpush1.bf16.msra.mxu0 0
    %144 = vmatprep.subr.bf16.mxu0 0
    %145 = vmatpush1.bf16.msra.mxu0 0
    %146 = vmatprep.subr.bf16.mxu0 0
    %147 = vmatpush1.bf16.msra.mxu0 0
    %148 = vmatprep.subr.bf16.mxu0 0
    %149 = vmatpush1.bf16.msra.mxu0 0
    %150 = vmatprep.mubr.bf16.mxu0 0
    %151 = vmatmul.mubr.bf16.gmra.mrb[0].mxu0 %v68
    %v152 = vpop.f32.mrb[0].mxu0
    %v153 = vadd.f32 0.0, %v152
    %v154 = vpop.f32.mrb[0].mxu0
    %v155 = vpop.f32.mrb[0].mxu0
    %v156 = vadd.f32 0.0, %v155
    %v157 = vpop.f32.mrb[0].mxu0
    %158 = vdwg.mxu0
    %s159 = sld [smem:[#allocation3]]
    %v160 = vstv %s159
    %v161 = vmul.f32 %v160, %v153
    %v162 = vmul.f32 %v160, %v156
    %v163 = vld [vmem:[%s3] sm:$0x1]
    %v165 = vlaneseq
    %v166 = vshrl.u32 %v165, 7
    %v167 = vsub.s32 0, %v166
    %v168 = vrot.slane %v163, %v167
    %v170 = vadd.f32 %v161, %v168
    %v171 = vadd.f32 %v162, %v168
    %172 = vst [vmem:[#allocation9] sm:$0xff] %v170
    %173 = vst [vmem:[#allocation9 + $0x8] sm:$0xff] %v171
    // Predicated region
    $region22: #{tpu_custom_call.1} parent=1 // pred_check
      _
    $region23: #{tpu_custom_call.1} parent=1 // pred_check_branch
      %175 = sbr.rel (0) target = $region25
    $region24: #{tpu_custom_call.1} parent=1 // pred_region
      %s177 = ssub.s32 256, 256
      %178 = vsyncadd [#allocation6], %s177
      %s179 = sshll.u32 [#allocation9], 4
      %s180 = int_to_ptr.vmem [resolvable:$true] %s179
      %185 = dma.vmem_to_hbm [thread:$0]  %s180, 256, %s4, [#allocation6], 128, 128, 8
    $region25: #{tpu_custom_call.1} parent=1 // pred_fallthru
      _
    // Predicated region
    $region26: #{tpu_custom_call.1} parent=1 // pred_check
      _
    $region27: #{tpu_custom_call.1} parent=1 // pred_check_branch
      %187 = sbr.rel (0) target = $region29
    $region28: #{tpu_custom_call.1} parent=1 // pred_region
      %188 = dma.done [#allocation6], 256
    $region29: #{tpu_custom_call.1} parent=1 // pred_fallthru
      _
    %189 = vsyncpa [#allocation5], 1
    %190 = vsyncpa [#allocation8], 1
    %191 = vsyncpa [#allocation6], 1

</llo_original>
